<compile_context>
chip_gen: v5e
topology: v5e:2x2
jax: 0.10.0
libtpu: 0.0.40
codegen_flags: <defaults>
</compile_context>

<pallas_src>
import functools

import jax
import jax.numpy as jnp
from jax import lax
from jax.experimental import pallas as pl
from jax.experimental.pallas import tpu as pltpu


def _fast_kernel(TB, L, ids_ref, tok_ref, pos_ref, out_ref):
    """Token table VMEM-resident; gather rows with in-kernel dynamic slices.

    ids_ref : (B*L,)    int32 SMEM (scalar-prefetched flattened token ids)
    tok_ref : (V, Dp)   f32 VMEM   (full table, constant block index)
    pos_ref : (L, Dp)   f32 VMEM   (position table, constant block index)
    out_ref : (TB,L,Dp) f32 VMEM   (TB whole sequences of the output)
    """
    base = pl.program_id(0) * (TB * L)

    for t in range(TB):                      # static -> no dynamic leading index
        row0 = base + t * L

        def body(p, carry, t=t, row0=row0):
            tok_id = ids_ref[row0 + p]       # SMEM scalar read (addressing path)
            out_ref[t, pl.ds(p, 1), :] = (
                tok_ref[pl.ds(tok_id, 1), :] + pos_ref[pl.ds(p, 1), :]
            )
            return carry

        lax.fori_loop(0, L, body, 0, unroll=min(8, L))


def _hbm_gather_kernel(TB, L, ids_ref, tok_hbm, pos_ref, out_ref, sem):
    """Table stays in HBM; per-row DMAs go straight into the output block.

    ids_ref : (B*L,)    int32 SMEM
    tok_hbm : (V, Dp)   f32 HBM (memory_space=pl.ANY; never fully VMEM-resident)
    pos_ref : (L, Dp)   f32 VMEM
    out_ref : (TB,L,Dp) f32 VMEM
    sem     : single shared DMA semaphore
    """
    base = pl.program_id(0) * (TB * L)
    TR = TB * L

    # Issue ALL row DMAs first (ids read before any wait), then drain once.
    for t in range(TB):
        row0 = base + t * L

        def issue(p, carry, t=t, row0=row0):
            tok_id = ids_ref[row0 + p]
            pltpu.make_async_copy(
                tok_hbm.at[pl.ds(tok_id, 1), :],
                out_ref.at[t, pl.ds(p, 1), :],
                sem,
            ).start()
            return carry

        lax.fori_loop(0, L, issue, 0, unroll=min(8, L))

    # Every copy moved one (1, Dp) row and signalled the same semaphore, so TR
    # same-sized waits retire them all (order irrelevant).
    def drain(p, carry):
        pltpu.make_async_copy(
            tok_hbm.at[pl.ds(0, 1), :],
            out_ref.at[0, pl.ds(0, 1), :],
            sem,
        ).wait()
        return carry

    lax.fori_loop(0, TR, drain, 0, unroll=min(8, TR))

    # One vectorized add: (TB, L, Dp) + (L, Dp) broadcast over the TB sequences.
    out_ref[...] = out_ref[...] + pos_ref[...]


def token_and_position_embedding(
    x_ids,
    tok_table,
    pos_table,
    *,
    max_rows_per_tile=512,
    vmem_table_budget_bytes=8 * 1024 * 1024,   # x2 double-buffer still fits v7x
    vmem_limit_bytes=40 * 1024 * 1024,
):
    """x_ids: (B, L) int; tok_table: (V, D) f32; pos_table: (L, D) f32 -> (B, L, D)."""
    B, L = x_ids.shape
    V, D = tok_table.shape
    assert pos_table.shape == (L, D)

    # Lane-dense embed dim: pad D up to a multiple of 128 so stores are unmasked
    # full-lane vst and each gathered row is >= 512 B.
    Dp = max(128, ((D + 127) // 128) * 128)
    if Dp != D:
        tok_table = jnp.pad(tok_table, ((0, 0), (0, Dp - D)))
        pos_table = jnp.pad(pos_table, ((0, 0), (0, Dp - D)))

    # PyTorch nn.Embedding raises on out-of-range ids; we clamp defensively so a
    # bad id can never become an out-of-bounds gather / HBM DMA.
    ids_flat = jnp.clip(x_ids.reshape(B * L).astype(jnp.int32), 0, V - 1)

    # Tile = TB whole sequences.  Block covers the full (L, Dp) trailing dims, so
    # the (8,128) rule holds for any maxlen.  Prefer a grid of >= 2 steps so the
    # "parallel" axis can be split across v7x's two TensorCores.
    divisors = [d for d in range(1, B + 1)
                if B % d == 0 and d * L <= max(L, max_rows_per_tile)]
    multi = [d for d in divisors if B // d >= 2]
    TB = max(multi) if multi else max(divisors)
    TR = TB * L
    grid = (B // TB,)

    table_fits_vmem = (V * Dp * 4) <= vmem_table_budget_bytes
    if table_fits_vmem:
        kernel = functools.partial(_fast_kernel, TB, L)
        tok_spec = pl.BlockSpec((V, Dp), lambda i, ids: (0, 0))   # resident table
        scratch = []
    else:
        kernel = functools.partial(_hbm_gather_kernel, TB, L)
        tok_spec = pl.BlockSpec(memory_space=pl.ANY)              # table stays in HBM
        scratch = [pltpu.SemaphoreType.DMA]                       # one shared DMA sem

    out = pl.pallas_call(
        kernel,
        out_shape=jax.ShapeDtypeStruct((B, L, Dp), tok_table.dtype),
        grid_spec=pltpu.PrefetchScalarGridSpec(
            num_scalar_prefetch=1,                                # ids -> SMEM
            grid=grid,
            in_specs=[
                tok_spec,
                pl.BlockSpec((L, Dp), lambda i, ids: (0, 0)),     # resident positions
            ],
            out_specs=pl.BlockSpec((TB, L, Dp), lambda i, ids: (i, 0, 0)),
            scratch_shapes=scratch,
        ),
        compiler_params=pltpu.CompilerParams(
            dimension_semantics=("parallel",),                    # sequence-tile axis
            vmem_limit_bytes=vmem_limit_bytes,
        ),
    )(ids_flat, tok_table, pos_table)

    return out[:, :, :D] if Dp != D else out


if __name__ == "__main__":
    def reference(x_ids, tok_table, pos_table):
        return tok_table[x_ids] + pos_table[None, :, :]

    key = jax.random.PRNGKey(0)

    # --- small shapes consistent with the module's forward (fast / VMEM path) ---
    maxlen, vocab_size, embed_dim, batch = 8, 16, 32, 2
    k_tok, k_pos, k_ids, key = jax.random.split(key, 4)
    tok_table = jax.random.normal(k_tok, (vocab_size, embed_dim), dtype=jnp.float32)
    pos_table = jax.random.normal(k_pos, (maxlen, embed_dim), dtype=jnp.float32)
    x_ids = jax.random.randint(k_ids, (batch, maxlen), 0, vocab_size, dtype=jnp.int32)

    out = jax.block_until_ready(token_and_position_embedding(x_ids, tok_table, pos_table))
    ref = reference(x_ids, tok_table, pos_table)
    assert out.shape == (batch, maxlen, embed_dim)
    assert jnp.allclose(out, ref, atol=1e-6, rtol=1e-6)

    # --- larger case: multi-step grid, TB>1, lane-dense D (fast / VMEM path) ---
    maxlen2, vocab2, embed2, batch2 = 32, 120, 128, 8
    k_tok2, k_pos2, k_ids2, key = jax.random.split(key, 4)
    tok2 = jax.random.normal(k_tok2, (vocab2, embed2), dtype=jnp.float32)
    pos2 = jax.random.normal(k_pos2, (maxlen2, embed2), dtype=jnp.float32)
    ids2 = jax.random.randint(k_ids2, (batch2, maxlen2), 0, vocab2, dtype=jnp.int32)

    out2 = jax.block_until_ready(token_and_position_embedding(ids2, tok2, pos2))
    ref2 = reference(ids2, tok2, pos2)
    assert out2.shape == (batch2, maxlen2, embed2)
    assert jnp.allclose(out2, ref2, atol=1e-6, rtol=1e-6)

    # --- same shapes, but force the HBM row-gather path (issue-all-then-drain DMA) ---
    out3 = jax.block_until_ready(
        token_and_position_embedding(ids2, tok2, pos2, vmem_table_budget_bytes=0))
    assert out3.shape == (batch2, maxlen2, embed2)
    assert jnp.allclose(out3, ref2, atol=1e-6, rtol=1e-6)

    print("KERNEL_OK")
</pallas_src>

<mosaic_0001>
module attributes {stable_mosaic.version = 11 : i64} {
  func.func @_fast_kernel(%arg0: i32, %arg1: memref<16xi32, #tpu.memory_space<smem>>, %arg2: memref<16x128xf32, #tpu.memory_space<vmem>>, %arg3: memref<8x128xf32, #tpu.memory_space<vmem>>, %arg4: memref<1x8x128xf32, #tpu.memory_space<vmem>>) attributes {dimension_semantics = [#tpu.dimension_semantics<parallel>], iteration_bounds = array<i64: 2>, scalar_prefetch = 1 : i64, scratch_operands = 0 : i64, tpu.core_type = #tpu.core_type<tc>, window_params = [{pipeline_mode = #tpu.pipeline_mode<synchronous>, transform_indices = @transform_0, window_bounds = array<i64: 16, 128>}, {pipeline_mode = #tpu.pipeline_mode<synchronous>, transform_indices = @transform_1, window_bounds = array<i64: 8, 128>}, {transform_indices = @transform_2, window_bounds = array<i64: 1, 8, 128>}]} {
    %c8_i32 = arith.constant 8 : i32
    %0 = arith.muli %arg0, %c8_i32 : i32
    %c0_i32 = arith.constant 0 : i32
    %1 = arith.addi %0, %c0_i32 : i32
    %c0_i32_0 = arith.constant 0 : i32
    %2 = arith.addi %1, %c0_i32_0 : i32
    %3 = arith.index_cast %2 : i32 to index
    %4 = memref.load %arg1[%3] : memref<16xi32, #tpu.memory_space<smem>>
    %5 = arith.index_cast %4 : i32 to index
    %c0 = arith.constant 0 : index
    %6 = vector.load %arg2[%5, %c0] : memref<16x128xf32, #tpu.memory_space<vmem>>, vector<1x128xf32>
    %7 = arith.index_cast %c0_i32_0 : i32 to index
    %c0_1 = arith.constant 0 : index
    %8 = vector.load %arg3[%7, %c0_1] : memref<8x128xf32, #tpu.memory_space<vmem>>, vector<1x128xf32>
    %9 = arith.addf %6, %8 : vector<1x128xf32>
    %c0_2 = arith.constant 0 : index
    %10 = arith.index_cast %c0_i32_0 : i32 to index
    %c0_3 = arith.constant 0 : index
    %11 = vector.load %arg4[%c0_2, %10, %c0_3] : memref<1x8x128xf32, #tpu.memory_space<vmem>>, vector<1x1x128xf32>
    %12 = vector.shape_cast %11 : vector<1x1x128xf32> to vector<1x128xf32>
    %13 = vector.shape_cast %9 : vector<1x128xf32> to vector<1x1x128xf32>
    tpu.vector_store %arg4[%c0_2, %10, %c0_3], %13 {strides = array<i32>} : memref<1x8x128xf32, #tpu.memory_space<vmem>>, vector<1x1x128xf32>,
    %c1_i32 = arith.constant 1 : i32
    %14 = arith.addi %1, %c1_i32 : i32
    %15 = arith.index_cast %14 : i32 to index
    %16 = memref.load %arg1[%15] : memref<16xi32, #tpu.memory_space<smem>>
    %17 = arith.index_cast %16 : i32 to index
    %c0_4 = arith.constant 0 : index
    %18 = vector.load %arg2[%17, %c0_4] : memref<16x128xf32, #tpu.memory_space<vmem>>, vector<1x128xf32>
    %19 = arith.index_cast %c1_i32 : i32 to index
    %c0_5 = arith.constant 0 : index
    %20 = vector.load %arg3[%19, %c0_5] : memref<8x128xf32, #tpu.memory_space<vmem>>, vector<1x128xf32>
    %21 = arith.addf %18, %20 : vector<1x128xf32>
    %c0_6 = arith.constant 0 : index
    %22 = arith.index_cast %c1_i32 : i32 to index
    %c0_7 = arith.constant 0 : index
    %23 = vector.load %arg4[%c0_6, %22, %c0_7] : memref<1x8x128xf32, #tpu.memory_space<vmem>>, vector<1x1x128xf32>
    %24 = vector.shape_cast %23 : vector<1x1x128xf32> to vector<1x128xf32>
    %25 = vector.shape_cast %21 : vector<1x128xf32> to vector<1x1x128xf32>
    tpu.vector_store %arg4[%c0_6, %22, %c0_7], %25 {strides = array<i32>} : memref<1x8x128xf32, #tpu.memory_space<vmem>>, vector<1x1x128xf32>,
    %c2_i32 = arith.constant 2 : i32
    %26 = arith.addi %1, %c2_i32 : i32
    %27 = arith.index_cast %26 : i32 to index
    %28 = memref.load %arg1[%27] : memref<16xi32, #tpu.memory_space<smem>>
    %29 = arith.index_cast %28 : i32 to index
    %c0_8 = arith.constant 0 : index
    %30 = vector.load %arg2[%29, %c0_8] : memref<16x128xf32, #tpu.memory_space<vmem>>, vector<1x128xf32>
    %31 = arith.index_cast %c2_i32 : i32 to index
    %c0_9 = arith.constant 0 : index
    %32 = vector.load %arg3[%31, %c0_9] : memref<8x128xf32, #tpu.memory_space<vmem>>, vector<1x128xf32>
    %33 = arith.addf %30, %32 : vector<1x128xf32>
    %c0_10 = arith.constant 0 : index
    %34 = arith.index_cast %c2_i32 : i32 to index
    %c0_11 = arith.constant 0 : index
    %35 = vector.load %arg4[%c0_10, %34, %c0_11] : memref<1x8x128xf32, #tpu.memory_space<vmem>>, vector<1x1x128xf32>
    %36 = vector.shape_cast %35 : vector<1x1x128xf32> to vector<1x128xf32>
    %37 = vector.shape_cast %33 : vector<1x128xf32> to vector<1x1x128xf32>
    tpu.vector_store %arg4[%c0_10, %34, %c0_11], %37 {strides = array<i32>} : memref<1x8x128xf32, #tpu.memory_space<vmem>>, vector<1x1x128xf32>,
    %c3_i32 = arith.constant 3 : i32
    %38 = arith.addi %1, %c3_i32 : i32
    %39 = arith.index_cast %38 : i32 to index
    %40 = memref.load %arg1[%39] : memref<16xi32, #tpu.memory_space<smem>>
    %41 = arith.index_cast %40 : i32 to index
    %c0_12 = arith.constant 0 : index
    %42 = vector.load %arg2[%41, %c0_12] : memref<16x128xf32, #tpu.memory_space<vmem>>, vector<1x128xf32>
    %43 = arith.index_cast %c3_i32 : i32 to index
    %c0_13 = arith.constant 0 : index
    %44 = vector.load %arg3[%43, %c0_13] : memref<8x128xf32, #tpu.memory_space<vmem>>, vector<1x128xf32>
    %45 = arith.addf %42, %44 : vector<1x128xf32>
    %c0_14 = arith.constant 0 : index
    %46 = arith.index_cast %c3_i32 : i32 to index
    %c0_15 = arith.constant 0 : index
    %47 = vector.load %arg4[%c0_14, %46, %c0_15] : memref<1x8x128xf32, #tpu.memory_space<vmem>>, vector<1x1x128xf32>
    %48 = vector.shape_cast %47 : vector<1x1x128xf32> to vector<1x128xf32>
    %49 = vector.shape_cast %45 : vector<1x128xf32> to vector<1x1x128xf32>
    tpu.vector_store %arg4[%c0_14, %46, %c0_15], %49 {strides = array<i32>} : memref<1x8x128xf32, #tpu.memory_space<vmem>>, vector<1x1x128xf32>,
    %c4_i32 = arith.constant 4 : i32
    %50 = arith.addi %1, %c4_i32 : i32
    %51 = arith.index_cast %50 : i32 to index
    %52 = memref.load %arg1[%51] : memref<16xi32, #tpu.memory_space<smem>>
    %53 = arith.index_cast %52 : i32 to index
    %c0_16 = arith.constant 0 : index
    %54 = vector.load %arg2[%53, %c0_16] : memref<16x128xf32, #tpu.memory_space<vmem>>, vector<1x128xf32>
    %55 = arith.index_cast %c4_i32 : i32 to index
    %c0_17 = arith.constant 0 : index
    %56 = vector.load %arg3[%55, %c0_17] : memref<8x128xf32, #tpu.memory_space<vmem>>, vector<1x128xf32>
    %57 = arith.addf %54, %56 : vector<1x128xf32>
    %c0_18 = arith.constant 0 : index
    %58 = arith.index_cast %c4_i32 : i32 to index
    %c0_19 = arith.constant 0 : index
    %59 = vector.load %arg4[%c0_18, %58, %c0_19] : memref<1x8x128xf32, #tpu.memory_space<vmem>>, vector<1x1x128xf32>
    %60 = vector.shape_cast %59 : vector<1x1x128xf32> to vector<1x128xf32>
    %61 = vector.shape_cast %57 : vector<1x128xf32> to vector<1x1x128xf32>
    tpu.vector_store %arg4[%c0_18, %58, %c0_19], %61 {strides = array<i32>} : memref<1x8x128xf32, #tpu.memory_space<vmem>>, vector<1x1x128xf32>,
    %c5_i32 = arith.constant 5 : i32
    %62 = arith.addi %1, %c5_i32 : i32
    %63 = arith.index_cast %62 : i32 to index
    %64 = memref.load %arg1[%63] : memref<16xi32, #tpu.memory_space<smem>>
    %65 = arith.index_cast %64 : i32 to index
    %c0_20 = arith.constant 0 : index
    %66 = vector.load %arg2[%65, %c0_20] : memref<16x128xf32, #tpu.memory_space<vmem>>, vector<1x128xf32>
    %67 = arith.index_cast %c5_i32 : i32 to index
    %c0_21 = arith.constant 0 : index
    %68 = vector.load %arg3[%67, %c0_21] : memref<8x128xf32, #tpu.memory_space<vmem>>, vector<1x128xf32>
    %69 = arith.addf %66, %68 : vector<1x128xf32>
    %c0_22 = arith.constant 0 : index
    %70 = arith.index_cast %c5_i32 : i32 to index
    %c0_23 = arith.constant 0 : index
    %71 = vector.load %arg4[%c0_22, %70, %c0_23] : memref<1x8x128xf32, #tpu.memory_space<vmem>>, vector<1x1x128xf32>
    %72 = vector.shape_cast %71 : vector<1x1x128xf32> to vector<1x128xf32>
    %73 = vector.shape_cast %69 : vector<1x128xf32> to vector<1x1x128xf32>
    tpu.vector_store %arg4[%c0_22, %70, %c0_23], %73 {strides = array<i32>} : memref<1x8x128xf32, #tpu.memory_space<vmem>>, vector<1x1x128xf32>,
    %c6_i32 = arith.constant 6 : i32
    %74 = arith.addi %1, %c6_i32 : i32
    %75 = arith.index_cast %74 : i32 to index
    %76 = memref.load %arg1[%75] : memref<16xi32, #tpu.memory_space<smem>>
    %77 = arith.index_cast %76 : i32 to index
    %c0_24 = arith.constant 0 : index
    %78 = vector.load %arg2[%77, %c0_24] : memref<16x128xf32, #tpu.memory_space<vmem>>, vector<1x128xf32>
    %79 = arith.index_cast %c6_i32 : i32 to index
    %c0_25 = arith.constant 0 : index
    %80 = vector.load %arg3[%79, %c0_25] : memref<8x128xf32, #tpu.memory_space<vmem>>, vector<1x128xf32>
    %81 = arith.addf %78, %80 : vector<1x128xf32>
    %c0_26 = arith.constant 0 : index
    %82 = arith.index_cast %c6_i32 : i32 to index
    %c0_27 = arith.constant 0 : index
    %83 = vector.load %arg4[%c0_26, %82, %c0_27] : memref<1x8x128xf32, #tpu.memory_space<vmem>>, vector<1x1x128xf32>
    %84 = vector.shape_cast %83 : vector<1x1x128xf32> to vector<1x128xf32>
    %85 = vector.shape_cast %81 : vector<1x128xf32> to vector<1x1x128xf32>
    tpu.vector_store %arg4[%c0_26, %82, %c0_27], %85 {strides = array<i32>} : memref<1x8x128xf32, #tpu.memory_space<vmem>>, vector<1x1x128xf32>,
    %c7_i32 = arith.constant 7 : i32
    %86 = arith.addi %1, %c7_i32 : i32
    %87 = arith.index_cast %86 : i32 to index
    %88 = memref.load %arg1[%87] : memref<16xi32, #tpu.memory_space<smem>>
    %89 = arith.index_cast %88 : i32 to index
    %c0_28 = arith.constant 0 : index
    %90 = vector.load %arg2[%89, %c0_28] : memref<16x128xf32, #tpu.memory_space<vmem>>, vector<1x128xf32>
    %91 = arith.index_cast %c7_i32 : i32 to index
    %c0_29 = arith.constant 0 : index
    %92 = vector.load %arg3[%91, %c0_29] : memref<8x128xf32, #tpu.memory_space<vmem>>, vector<1x128xf32>
    %93 = arith.addf %90, %92 : vector<1x128xf32>
    %c0_30 = arith.constant 0 : index
    %94 = arith.index_cast %c7_i32 : i32 to index
    %c0_31 = arith.constant 0 : index
    %95 = vector.load %arg4[%c0_30, %94, %c0_31] : memref<1x8x128xf32, #tpu.memory_space<vmem>>, vector<1x1x128xf32>
    %96 = vector.shape_cast %95 : vector<1x1x128xf32> to vector<1x128xf32>
    %97 = vector.shape_cast %93 : vector<1x128xf32> to vector<1x1x128xf32>
    tpu.vector_store %arg4[%c0_30, %94, %c0_31], %97 {strides = array<i32>} : memref<1x8x128xf32, #tpu.memory_space<vmem>>, vector<1x1x128xf32>,
    %c8_i32_32 = arith.constant 8 : i32
    return
  }
  func.func @transform_0(%arg0: i32, %arg1: memref<16xi32, #tpu.memory_space<smem>>) -> (i32, i32) {
    %c0_i32 = arith.constant 0 : i32
    %c0_i32_0 = arith.constant 0 : i32
    %c0_i32_1 = arith.constant 0 : i32
    return %c0_i32, %c0_i32_0 : i32, i32
  }
  func.func @transform_1(%arg0: i32, %arg1: memref<16xi32, #tpu.memory_space<smem>>) -> (i32, i32) {
    %c0_i32 = arith.constant 0 : i32
    %c0_i32_0 = arith.constant 0 : i32
    %c0_i32_1 = arith.constant 0 : i32
    return %c0_i32, %c0_i32_0 : i32, i32
  }
  func.func @transform_2(%arg0: i32, %arg1: memref<16xi32, #tpu.memory_space<smem>>) -> (i32, i32, i32) {
    %c0_i32 = arith.constant 0 : i32
    %c0_i32_0 = arith.constant 0 : i32
    %c0_i32_1 = arith.constant 0 : i32
    return %arg0, %c0_i32, %c0_i32_0 : i32, i32, i32
  }
}

</mosaic_0001>

<llo_original>
// kernel: tpu_custom_call.1
$region0: #{tpu_custom_call.1}
  #allocation0 [shape = 'u32[]', space=smem, size = 0x4, offset = 0x4, fixed_abs, tag = 'smem constant byte address 0x4 - core index']
  #allocation1 [shape = 'u32[72,128]{1,0:T(1,128)}', space=vmem, size = 0x9000, scoped, tag = 'internal scratch']
  #allocation2 [shape = 's32[1]{0}', space=sflag, size = 0x4, scoped, tag = 'scoped memory for tpu_custom_call.1']
  #allocation3 [shape = 'u8[512]{0}', space=smem, size = 0x200, scoped, tag = 'prefetched SMEM operand 0']
  %s0 = inlined_call_operand.hbm [shape: s32[16], index: 0, kind: input, shape index: {}]
  %s1 = inlined_call_operand.hbm [shape: f32[16,128], index: 1, kind: input, shape index: {}]
  %s2 = inlined_call_operand.hbm [shape: f32[8,128], index: 2, kind: input, shape index: {}]
  %s3 = inlined_call_operand.hbm [shape: f32[2,8,128], index: 3, kind: output, shape index: {}]
  %s4 = sld [smem:[#allocation0]]
  $region49: #{tpu_custom_call.1} parent=0
    _
  %s6 = ssub.s32 1, %s4
  %s7 = scalar_select 0, %s6, %s4
  %s9 = sshll.u32 %s0, 4
  %s10 = int_to_ptr.hbm [resolvable:$true] %s9
  %12 = dma.hbm_to_smem %s10, 16, [#allocation3], [#allocation2]
  %14 = dma.done [#allocation2], 16
  %15 = sfence
  $region1: #{tpu_custom_call.1} parent=0
    #allocation4 [shape = 'u8[8192]{0}', space=vmem, size = 0x2000, scoped, tag = 'input window, operand 1, single buffered']
    #allocation5 [shape = 's32[2]{0}', space=sflag, size = 0x8, scoped, tag = 'scoped memory for tpu_custom_call.1']
    #allocation6 [shape = 's32[2]{0}', space=sflag, size = 0x8, scoped, tag = 'scoped memory for tpu_custom_call.1']
    #allocation7 [shape = 'u8[4096]{0}', space=vmem, size = 0x1000, scoped, tag = 'input window, operand 2, single buffered']
    #allocation8 [shape = 's32[1]{0}', space=sflag, size = 0x4, scoped, tag = 'scoped memory for tpu_custom_call.1']
    #allocation9 [shape = 'u8[8192]{0}', space=vmem, size = 0x2000, scoped, tag = 'output window, operand 0']
    %16 = vsyncpa [#allocation5], 0
    %17 = vsyncpa [#allocation8], 0
    %18 = vsyncpa [#allocation6], 0
    %s19 = scalar_lea.sflag [#allocation6], 1
    %20 = vsyncpa %s19, 0
    loop: start=0, step=1, limit=4
    $region2: #{tpu_custom_call.1} parent=1 // loop_pre_header
      _
    $region3: #{tpu_custom_call.1} parent=1 // loop_header
      %s22 = sphi 0, %s26
      %p23 = scmp.ge.s32.totalorder %s22, 4
      %s30 = sphi 0, %s30
      %s32 = sphi 0, %s30
      %s33 = sphi 0, %s32
      %s47 = sphi 0, %s33
      %s51 = sphi 0, %s51
      %s53 = sphi 0, %s51
      %s54 = sphi 0, %s53
      %s68 = sphi 0, %s54
      %s74 = sphi 0, %s76
      %s77 = sphi 0, %s74
      %s78 = sphi 0, %s77
      %s94 = sphi 0, %s78
    $region4: #{tpu_custom_call.1} parent=1 // loop_header_branch
      %25 = sbr.rel (%p23) target = $region8
    $region5: #{tpu_custom_call.1} parent=1 // loop_body
      %s27 = ssub.s32 %s22, 1
      %s28 = ssub.s32 %s22, 2
      %s29 = sadd.s32 %s22, 1
      %s31 = sadd.s32 %s30, 1
      %p34 = scmp.eq.s32.totalorder %s22, 1
      %p35 = scmp.ne.s32.totalorder %s30, %s32
      %p36 = scmp.eq.s32.totalorder %s22, 0
      %p37 = por %p35, %p36
      %p38 = scmp.ne.s32.totalorder %s30, %s32
      %p39 = scmp.eq.s32.totalorder %s27, 1
      %p40 = por %p38, %p39
      %p41 = scmp.ne.s32.totalorder %s32, %s33
      %p42 = scmp.eq.s32.totalorder %s27, 0
      %p43 = por %p41, %p42
      %p44 = scmp.ne.s32.totalorder %s32, %s33
      %p45 = scmp.eq.s32.totalorder %s28, 1
      %p46 = por %p44, %p45
      %p48 = scmp.ne.s32.totalorder %s33, %s47
      %p49 = scmp.eq.s32.totalorder %s28, 0
      %p50 = por %p48, %p49
      %s52 = sadd.s32 %s51, 1
      %p55 = scmp.eq.s32.totalorder %s22, 1
      %p56 = scmp.ne.s32.totalorder %s51, %s53
      %p57 = scmp.eq.s32.totalorder %s22, 0
      %p58 = por %p56, %p57
      %p59 = scmp.ne.s32.totalorder %s51, %s53
      %p60 = scmp.eq.s32.totalorder %s27, 1
      %p61 = por %p59, %p60
      %p62 = scmp.ne.s32.totalorder %s53, %s54
      %p63 = scmp.eq.s32.totalorder %s27, 0
      %p64 = por %p62, %p63
      %p65 = scmp.ne.s32.totalorder %s53, %s54
      %p66 = scmp.eq.s32.totalorder %s28, 1
      %p67 = por %p65, %p66
      %p69 = scmp.ne.s32.totalorder %s54, %s68
      %p70 = scmp.eq.s32.totalorder %s28, 0
      %p71 = por %p69, %p70
      %s72 = ssub.s32 %s22, %s29
      %p73 = scmp.eq.s32.totalorder %s72, 0
      %s75 = sadd.s32 %s74, 1
      %s76 = scalar_select %p73, %s74, %s75
      %p79 = pneg %p73
      %p80 = scmp.eq.s32.totalorder %s22, 1
      %p81 = por %p79, %p80
      %p82 = scmp.ne.s32.totalorder %s74, %s77
      %p83 = scmp.eq.s32.totalorder %s22, 0
      %p84 = por %p82, %p83
      %p85 = scmp.ne.s32.totalorder %s74, %s77
      %p86 = scmp.eq.s32.totalorder %s27, 1
      %p87 = por %p85, %p86
      %p88 = scmp.ne.s32.totalorder %s77, %s78
      %p89 = scmp.eq.s32.totalorder %s27, 0
      %p90 = por %p88, %p89
      %p91 = scmp.ne.s32.totalorder %s77, %s78
      %p92 = scmp.eq.s32.totalorder %s28, 1
      %p93 = por %p91, %p92
      %p95 = scmp.ne.s32.totalorder %s78, %s94
      %p96 = scmp.eq.s32.totalorder %s28, 0
      %p97 = por %p95, %p96
      %p98 = scmp.le.s32.totalorder 1, %s22
      %p99 = scmp.lt.s32.totalorder %s22, 3
      %p100 = pnand %p98, %p99
      %p101 = pneg %p100
      // Predicated region
      $region9: #{tpu_custom_call.1} parent=5 // pred_check
        _
      $region10: #{tpu_custom_call.1} parent=5 // pred_check_branch
        %103 = sbr.rel (%p100) target = $region12
      $region11: #{tpu_custom_call.1} parent=5 // pred_region
        %s104 = ssub.s32 %s22, 1
        // Predicated region
        $region13: #{tpu_custom_call.1} parent=11 // pred_check
          %p105 = pneg %p43
        $region14: #{tpu_custom_call.1} parent=11 // pred_check_branch
          %107 = sbr.rel (%p105) target = $region16
        $region15: #{tpu_custom_call.1} parent=11 // pred_region
          %109 = vsyncadd [#allocation5], 0
          %s110 = sshll.u32 %s1, 4
          %s111 = int_to_ptr.hbm [resolvable:$true] %s110
          %s112 = sshll.u32 [#allocation4], 4
          %s113 = int_to_ptr.vmem [resolvable:$true] %s112
          %118 = dma.hbm_to_vmem [thread:$0]  %s111, 256, %s113, [#allocation5], 128, 128, 8
        $region16: #{tpu_custom_call.1} parent=11 // pred_fallthru
          _
        // Predicated region
        $region17: #{tpu_custom_call.1} parent=11 // pred_check
          %p119 = pneg %p64
        $region18: #{tpu_custom_call.1} parent=11 // pred_check_branch
          %121 = sbr.rel (%p119) target = $region20
        $region19: #{tpu_custom_call.1} parent=11 // pred_region
          %123 = vsyncadd [#allocation8], 0
          %s125 = sshll.u32 %s2, 4
          %s126 = int_to_ptr.hbm [resolvable:$true] %s125
          %s127 = sshll.u32 [#allocation7], 4
          %s128 = int_to_ptr.vmem [resolvable:$true] %s127
          %130 = dma.hbm_to_vmem [thread:$0]  %s126, 128, %s128, [#allocation8]
        $region20: #{tpu_custom_call.1} parent=11 // pred_fallthru
          _
      $region12: #{tpu_custom_call.1} parent=5 // pred_fallthru
        _
      %p131 = scmp.lt.s32.totalorder %s22, 2
      // Predicated region
      $region21: #{tpu_custom_call.1} parent=5 // pred_check
        %p132 = pneg %p131
      $region22: #{tpu_custom_call.1} parent=5 // pred_check_branch
        %134 = sbr.rel (%p132) target = $region24
      $region23: #{tpu_custom_call.1} parent=5 // pred_region
        _
      $region24: #{tpu_custom_call.1} parent=5 // pred_fallthru
        _
      %p135 = scmp.le.s32.totalorder 1, %s22
      %p136 = scmp.lt.s32.totalorder %s22, 3
      %p137 = pnand %p135, %p136
      %p138 = pneg %p137
      // Predicated region
      $region25: #{tpu_custom_call.1} parent=5 // pred_check
        _
      $region26: #{tpu_custom_call.1} parent=5 // pred_check_branch
        %140 = sbr.rel (%p137) target = $region28
      $region27: #{tpu_custom_call.1} parent=5 // pred_region
        %s141 = ssub.s32 %s22, 1
        // Predicated region
        $region29: #{tpu_custom_call.1} parent=27 // pred_check
          %p142 = pneg %p43
        $region30: #{tpu_custom_call.1} parent=27 // pred_check_branch
          %144 = sbr.rel (%p142) target = $region32
        $region31: #{tpu_custom_call.1} parent=27 // pred_region
          %146 = dma.done [#allocation5], 256
        $region32: #{tpu_custom_call.1} parent=27 // pred_fallthru
          _
        // Predicated region
        $region33: #{tpu_custom_call.1} parent=27 // pred_check
          %p147 = pneg %p64
        $region34: #{tpu_custom_call.1} parent=27 // pred_check_branch
          %149 = sbr.rel (%p147) target = $region36
        $region35: #{tpu_custom_call.1} parent=27 // pred_region
          %151 = dma.done [#allocation8], 128
        $region36: #{tpu_custom_call.1} parent=27 // pred_fallthru
          _
        %p152 = pneg %p43
        %p153 = pneg %p40
        %p154 = pneg %p64
        %p155 = pneg %p61
        %p156 = pneg %p90
        %p157 = pneg %p87
        %s158 = sand.u32 %s77, 1
        %s159 = scalar_lea.sflag [#allocation6], %s158
        %s160 = sand.u32 %s77, 1
        %s161 = smul.addr %s160, 8
        %s162 = scalar_lea.vmem [#allocation9], %s161
        %s163 = smul.u32 %s27, 8
        %s164 = sld [smem:[#allocation3 + %s163]]
        %s165 = scalar_lea.vmem [#allocation4], %s164
        %v166 = vld [vmem:[%s165] sm:$0x1]
        %v167 = vld [vmem:[#allocation7] sm:$0x1]
        %v168 = vadd.f32 %v166, %v167
        %169 = vst [vmem:[%s162] sm:$0x1] %v168
        %s170 = sadd.s32 %s163, 1
        %s171 = sld [smem:[#allocation3 + %s170]]
        %s172 = scalar_lea.vmem [#allocation4], %s171
        %v173 = vld [vmem:[%s172] sm:$0x1]
        %v174 = vld [vmem:[#allocation7 + $0x1] sm:$0x1]
        %v175 = vadd.f32 %v173, %v174
        %176 = vst [vmem:[%s162 + $0x1] sm:$0x1] %v175
        %s177 = sadd.s32 %s163, 2
        %s178 = sld [smem:[#allocation3 + %s177]]
        %s179 = scalar_lea.vmem [#allocation4], %s178
        %v180 = vld [vmem:[%s179] sm:$0x1]
        %v181 = vld [vmem:[#allocation7 + $0x2] sm:$0x1]
        %v182 = vadd.f32 %v180, %v181
        %183 = vst [vmem:[%s162 + $0x2] sm:$0x1] %v182
        %s184 = sadd.s32 %s163, 3
        %s185 = sld [smem:[#allocation3 + %s184]]
        %s186 = scalar_lea.vmem [#allocation4], %s185
        %v187 = vld [vmem:[%s186] sm:$0x1]
        %v188 = vld [vmem:[#allocation7 + $0x3] sm:$0x1]
        %v189 = vadd.f32 %v187, %v188
        %190 = vst [vmem:[%s162 + $0x3] sm:$0x1] %v189
        %s191 = sadd.s32 %s163, 4
        %s192 = sld [smem:[#allocation3 + %s191]]
        %s193 = scalar_lea.vmem [#allocation4], %s192
        %v194 = vld [vmem:[%s193] sm:$0x1]
        %v195 = vld [vmem:[#allocation7 + $0x4] sm:$0x1]
        %v196 = vadd.f32 %v194, %v195
        %197 = vst [vmem:[%s162 + $0x4] sm:$0x1] %v196
        %s198 = sadd.s32 %s163, 5
        %s199 = sld [smem:[#allocation3 + %s198]]
        %s200 = scalar_lea.vmem [#allocation4], %s199
        %v201 = vld [vmem:[%s200] sm:$0x1]
        %v202 = vld [vmem:[#allocation7 + $0x5] sm:$0x1]
        %v203 = vadd.f32 %v201, %v202
        %204 = vst [vmem:[%s162 + $0x5] sm:$0x1] %v203
        %s205 = sadd.s32 %s163, 6
        %s206 = sld [smem:[#allocation3 + %s205]]
        %s207 = scalar_lea.vmem [#allocation4], %s206
        %v208 = vld [vmem:[%s207] sm:$0x1]
        %v209 = vld [vmem:[#allocation7 + $0x6] sm:$0x1]
        %v210 = vadd.f32 %v208, %v209
        %211 = vst [vmem:[%s162 + $0x6] sm:$0x1] %v210
        %s212 = sadd.s32 %s163, 7
        %s213 = sld [smem:[#allocation3 + %s212]]
        %s214 = scalar_lea.vmem [#allocation4], %s213
        %v215 = vld [vmem:[%s214] sm:$0x1]
        %v216 = vld [vmem:[#allocation7 + $0x7] sm:$0x1]
        %v217 = vadd.f32 %v215, %v216
        %218 = vst [vmem:[%s162 + $0x7] sm:$0x1] %v217
        %s219 = sand.u32 %s77, 1
        %s220 = scalar_lea.sflag [#allocation6], %s219
        %s221 = sand.u32 %s77, 1
        %s222 = smul.addr %s221, 8
        %s223 = scalar_lea.vmem [#allocation9], %s222
        // Predicated region
        $region37: #{tpu_custom_call.1} parent=27 // pred_check
          %p224 = pneg %p87
        $region38: #{tpu_custom_call.1} parent=27 // pred_check_branch
          %226 = sbr.rel (%p224) target = $region40
        $region39: #{tpu_custom_call.1} parent=27 // pred_region
          %228 = vsyncadd %s220, 0
          %s229 = smul.addr %s27, 8
          %s230 = scalar_lea.hbm %s3, %s229
          %s232 = sshll.u32 %s223, 4
          %s233 = int_to_ptr.vmem [resolvable:$true] %s232
          %s234 = sshll.u32 %s230, 4
          %s235 = int_to_ptr.hbm [resolvable:$true] %s234
          %237 = dma.vmem_to_hbm [thread:$0]  %s233, 128, %s235, %s220
        $region40: #{tpu_custom_call.1} parent=27 // pred_fallthru
          _
      $region28: #{tpu_custom_call.1} parent=5 // pred_fallthru
        _
      %p238 = scmp.le.s32.totalorder 2, %s22
      // Predicated region
      $region41: #{tpu_custom_call.1} parent=5 // pred_check
        %p239 = pneg %p238
      $region42: #{tpu_custom_call.1} parent=5 // pred_check_branch
        %241 = sbr.rel (%p239) target = $region44
      $region43: #{tpu_custom_call.1} parent=5 // pred_region
        %s242 = ssub.s32 %s22, 2
        // Predicated region
        $region45: #{tpu_custom_call.1} parent=43 // pred_check
          %p243 = pneg %p93
        $region46: #{tpu_custom_call.1} parent=43 // pred_check_branch
          %245 = sbr.rel (%p243) target = $region48
        $region47: #{tpu_custom_call.1} parent=43 // pred_region
          %s246 = sand.u32 %s78, 1
          %s247 = scalar_lea.sflag [#allocation6], %s246
          %s248 = sand.u32 %s78, 1
          %s249 = smul.addr %s248, 8
          %s250 = scalar_lea.vmem [#allocation9], %s249
          %252 = dma.done %s247, 128
        $region48: #{tpu_custom_call.1} parent=43 // pred_fallthru
          _
      $region44: #{tpu_custom_call.1} parent=5 // pred_fallthru
        _
    $region6: #{tpu_custom_call.1} parent=1 // loop_footer
      %s26 = sadd.s32 1, %s22
    $region7: #{tpu_custom_call.1} parent=1 // loop_footer_branch
      %21 = sbr.rel target = $region3
    $region8: #{tpu_custom_call.1} parent=1 // loop_exit
      _
    %253 = vsyncpa [#allocation5], 1
    %s254 = scalar_lea.sflag [#allocation5], 1
    %255 = vsyncpa %s254, 1
    %256 = vsyncpa [#allocation8], 1
    %257 = vsyncpa [#allocation6], 1
    %s258 = scalar_lea.sflag [#allocation6], 1
    %259 = vsyncpa %s258, 1

</llo_original>
